<compile_context>
chip_gen: v5e
topology: v5e:2x2
jax: 0.10.0
libtpu: 0.0.40
codegen_flags: <defaults>
</compile_context>

<pallas_src>
import numpy as np
import jax
import jax.numpy as jnp
from jax.experimental import pallas as pl
from jax.experimental.pallas import tpu as pltpu

F32 = jnp.float32
BF16 = jnp.bfloat16
BN_EPS = 1e-5
LN_EPS = 1e-5
HID = 256                      # attention hidden dim (hard-coded to 256 in the module)
PF = 512                       # positionwise feed-forward dim (hard-coded)
TM_PT = 1024                   # point-row tile for the PPmodel kernel
TM_VOX = 512                   # voxel-row tile for the fused cross-attention kernel
VMEM_LIMIT = 40 * 1024 * 1024  # explicit scoped-VMEM limit (safe on v5e/v6e/v7x)
HIGHEST = jax.lax.Precision.HIGHEST


def _round_up(x, m):
    return ((x + m - 1) // m) * m


# ---------------------------------------------------------------------------
# Kernel 1: PPmodel point MLP (eval-mode BatchNorms folded into the Linears)
#   relu(x@W1+b1) -> relu(@W2+b2) -> relu(@W3+b3) -> @W4+b4
# First layer (K = fea_dim = 3) is done on the VPU as rank-1 broadcast FMAs;
# the remaining matmuls run bf16 on the MXU with f32 accumulation; bf16 output.
# ---------------------------------------------------------------------------
def ppmodel_kernel(x_ref, w1, b1, w2, b2, w3, b3, w4, b4, o_ref):
    x = x_ref[...]
    w1a = w1[...]
    fdim = x.shape[1]                       # static (3), tiny -> unrolled VPU form
    h = b1[...] + x[:, 0:1] * w1a[0:1, :]
    for j in range(1, fdim):
        h = h + x[:, j:j + 1] * w1a[j:j + 1, :]
    h = jnp.maximum(h, 0.0)
    h = jnp.maximum(
        jnp.dot(h.astype(BF16), w2[...], preferred_element_type=F32) + b2[...], 0.0)
    h = jnp.maximum(
        jnp.dot(h.astype(BF16), w3[...], preferred_element_type=F32) + b3[...], 0.0)
    out = jnp.dot(h.astype(BF16), w4[...], preferred_element_type=F32) + b4[...]
    o_ref[...] = out.astype(o_ref.dtype)    # bf16 writeback (halves HBM write traffic)


def ppmodel_forward(x, folded, out_dim):
    w1, b1, w2, b2, w3, b3, w4, b4 = folded
    w2b, w3b, w4b = w2.astype(BF16), w3.astype(BF16), w4.astype(BF16)
    n, f = x.shape
    tm = TM_PT if n >= TM_PT else n         # clamp tile; edge tiles masked on store
    grid = pl.cdiv(n, tm)

    def full(a):
        return pl.BlockSpec(a.shape, lambda i: (0, 0))

    out = pl.pallas_call(
        ppmodel_kernel,
        out_shape=jax.ShapeDtypeStruct((n, out_dim), BF16),
        grid_spec=pltpu.PrefetchScalarGridSpec(
            num_scalar_prefetch=0,
            grid=(grid,),
            in_specs=[
                pl.BlockSpec((tm, f), lambda i: (i, 0)),
                full(w1), full(b1),
                full(w2b), full(b2),
                full(w3b), full(b3),
                full(w4b), full(b4),
            ],
            out_specs=pl.BlockSpec((tm, out_dim), lambda i: (i, 0)),
        ),
        compiler_params=pltpu.CompilerParams(
            dimension_semantics=("parallel",),
            vmem_limit_bytes=VMEM_LIMIT),
    )(x, w1, b1, w2b, b2, w3b, b3, w4b, b4)
    return out


# ---------------------------------------------------------------------------
# Kernel 2: fused CrossAttention (1 layer, 1 head, trg_len=1, src_len=4)
#   + residual LayerNorms + FFN + comp_attn(512->256) + fused (wc2@wfc) compression.
#   q/k matmuls are algebraically folded into a single trg @ Wqk; the V projection is
#   applied once, after the softmax mix; the final weight is zero-padded to 128 lanes
#   so the output store is lane-dense.
# ---------------------------------------------------------------------------
def _ln(x, g, b):
    mu = jnp.mean(x, axis=-1, keepdims=True)
    ms = jnp.mean(x * x, axis=-1, keepdims=True)   # back-to-back XLU reductions
    var = ms - mu * mu
    return (x - mu) * jax.lax.rsqrt(var + LN_EPS) * g + b


def cross_attn_kernel(trg_ref, s0_ref, s1_ref, s2_ref, s3_ref,
                      wqk, vkb, wv, bv, wo, bo, g1, be1,
                      wf1, bf1, wf2, bf2, g2, be2,
                      wc1a, wc1b, bc1, wc2f, bc2f, o_ref):
    trg_b = trg_ref[...]                    # bf16 (from PPmodel / segment_max)
    trg_f = trg_b.astype(F32)               # f32 copy for residual / LayerNorm path
    # Folded q/k: A = trg @ ((scale*Wq)@Wk^T) + (scale*bq)@Wk^T ; score_i = rowsum(A*s_i)
    # (source-independent per-row terms cancel inside the softmax).
    a = jnp.dot(trg_b, wqk[...], preferred_element_type=F32) + vkb[...]
    s0 = s0_ref[...].astype(F32)
    s1 = s1_ref[...].astype(F32)
    s2 = s2_ref[...].astype(F32)
    s3 = s3_ref[...].astype(F32)
    sc0 = jnp.sum(a * s0, axis=-1, keepdims=True)
    sc1 = jnp.sum(a * s1, axis=-1, keepdims=True)
    sc2 = jnp.sum(a * s2, axis=-1, keepdims=True)
    sc3 = jnp.sum(a * s3, axis=-1, keepdims=True)
    mx = jnp.maximum(jnp.maximum(sc0, sc1), jnp.maximum(sc2, sc3))
    e0 = jnp.exp(sc0 - mx)
    e1 = jnp.exp(sc1 - mx)
    e2 = jnp.exp(sc2 - mx)
    e3 = jnp.exp(sc3 - mx)
    inv = pl.reciprocal(e0 + e1 + e2 + e3, approx=True)
    # Mix the sources first, then one V projection (attention weights sum to 1).
    s_mix = (e0 * s0 + e1 * s1 + e2 * s2 + e3 * s3) * inv
    attn = jnp.dot(s_mix.astype(BF16), wv[...], preferred_element_type=F32) + bv[...]
    attn = jnp.dot(attn.astype(BF16), wo[...], preferred_element_type=F32) + bo[...]
    x = _ln(trg_f + attn, g1[...], be1[...])               # self_attn_layer_norm
    h = jnp.maximum(
        jnp.dot(x.astype(BF16), wf1[...], preferred_element_type=F32) + bf1[...], 0.0)
    h = jnp.dot(h.astype(BF16), wf2[...], preferred_element_type=F32) + bf2[...]
    y = _ln(x + h, g2[...], be2[...])                      # ff_layer_norm
    # comp_attn on concat([trg, y], -1): split-weight form (no concat needed)
    c = jnp.maximum(
        jnp.dot(trg_b, wc1a[...], preferred_element_type=F32)
        + jnp.dot(y.astype(BF16), wc1b[...], preferred_element_type=F32) + bc1[...], 0.0)
    # fused comp_attn[-1] (256->128) and fea_compression (128->fea_compre), lane-padded
    o_ref[...] = jnp.maximum(
        jnp.dot(c.astype(BF16), wc2f[...], preferred_element_type=F32) + bc2f[...], 0.0)


def _prep_attn_weights(ap, fea_compre, out_pad):
    scale = 1.0 / (float(HID) ** 0.5)             # single head => head_dim == HID
    wq_s = ap['wq'] * scale
    bq_s = ap['bq'] * scale
    # Fold Wq/Wk in f32 (HIGHEST) before casting to bf16 (avoids compounding rounding).
    wqk = jnp.dot(wq_s, ap['wk'].T, precision=HIGHEST).astype(BF16)   # [HID, HID]
    vkb = jnp.dot(bq_s, ap['wk'].T, precision=HIGHEST)                # [1, HID] f32
    wv, bv = ap['wv'].astype(BF16), ap['bv']
    wo, bo = ap['wo'].astype(BF16), ap['bo']
    wf1, bf1 = ap['wf1'].astype(BF16), ap['bf1']
    wf2, bf2 = ap['wf2'].astype(BF16), ap['bf2']
    wc1a = ap['wc1'][:HID].astype(BF16)
    wc1b = ap['wc1'][HID:].astype(BF16)
    # wc2 @ wfc fused offline (no nonlinearity between them), zero-padded to a
    # lane-dense out_pad-wide output column block.
    wc2f = jnp.dot(ap['wc2'], ap['wfc'], precision=HIGHEST)
    bc2f = jnp.dot(ap['bc2'], ap['wfc'], precision=HIGHEST) + ap['bfc']
    wc2f = jnp.zeros((HID, out_pad), F32).at[:, :fea_compre].set(wc2f).astype(BF16)
    bc2f = jnp.zeros((1, out_pad), F32).at[:, :fea_compre].set(bc2f)
    return (wqk, vkb, wv, bv, wo, bo,
            ap['g1'], ap['be1'], wf1, bf1, wf2, bf2, ap['g2'], ap['be2'],
            wc1a, wc1b, ap['bc1'], wc2f, bc2f)


def cross_attention_forward(trg, pix, seg1, seg2, seg3, ap, fea_compre):
    m = trg.shape[0]
    tm = TM_VOX if m >= TM_VOX else m          # clamp tile; edge tiles masked on store
    grid = pl.cdiv(m, tm)
    out_pad = _round_up(max(fea_compre, 1), 128)
    weights = _prep_attn_weights(ap, fea_compre, out_pad)

    def full(a):
        return pl.BlockSpec(a.shape, lambda i: (0, 0))

    def rows(d):
        return pl.BlockSpec((tm, d), lambda i: (i, 0))

    # bf16 streaming inputs (half the DMA bytes / input double-buffer VMEM).
    trg_b = trg.astype(BF16)
    srcs = [s.astype(BF16) for s in (pix, seg1, seg2, seg3)]

    out = pl.pallas_call(
        cross_attn_kernel,
        out_shape=jax.ShapeDtypeStruct((m, out_pad), F32),
        grid_spec=pltpu.PrefetchScalarGridSpec(
            num_scalar_prefetch=0,
            grid=(grid,),
            in_specs=[rows(HID)] * 5 + [full(w) for w in weights],
            out_specs=pl.BlockSpec((tm, out_pad), lambda i: (i, 0)),
        ),
        compiler_params=pltpu.CompilerParams(
            dimension_semantics=("parallel",),
            vmem_limit_bytes=VMEM_LIMIT),
    )(trg_b, *srcs, *weights)
    return out[:, :fea_compre]


# ---------------------------------------------------------------------------
# Deterministic parameter construction (synthetic, no checkpoints)
# ---------------------------------------------------------------------------
def _dense(key, fan_in, fan_out):
    kw, kb = jax.random.split(key)
    w = jax.random.normal(kw, (fan_in, fan_out), F32) * 0.05
    b = jax.random.normal(kb, (1, fan_out), F32) * 0.05
    return w, b


def _bn(key, dim):
    k1, k2, k3, k4 = jax.random.split(key, 4)
    g = 1.0 + 0.1 * jax.random.normal(k1, (dim,), F32)
    b = 0.1 * jax.random.normal(k2, (dim,), F32)
    rm = 0.1 * jax.random.normal(k3, (dim,), F32)
    rv = 1.0 + 0.1 * jnp.abs(jax.random.normal(k4, (dim,), F32))
    return g, b, rm, rv


def build_ppmodel_params(key, fea_dim, out_dim):
    k = jax.random.split(key, 8)
    w1, b1 = _dense(k[1], fea_dim, 64)
    w2, b2 = _dense(k[3], 64, 128)
    w3, b3 = _dense(k[5], 128, 256)
    w4, b4 = _dense(k[7], 256, out_dim)
    return {
        'bn0': _bn(k[0], fea_dim),
        'w1': w1, 'b1': b1, 'bn1': _bn(k[2], 64),
        'w2': w2, 'b2': b2, 'bn2': _bn(k[4], 128),
        'w3': w3, 'b3': b3, 'bn3': _bn(k[6], 256),
        'w4': w4, 'b4': b4,
    }


def fold_ppmodel(pp):
    def affine(bn):
        g, b, rm, rv = bn
        s = g / jnp.sqrt(rv + BN_EPS)
        return s, b - rm * s

    def fold(w, b, s_pre, t_pre, bn_post):
        b_new = jnp.dot(t_pre, w, precision=HIGHEST) + b
        w_new = w * s_pre[:, None]
        if bn_post is not None:
            s, t = affine(bn_post)
            w_new = w_new * s[None, :]
            b_new = b_new * s + t
        return w_new, b_new

    s0, t0 = affine(pp['bn0'])
    ident = lambda d: (jnp.ones((d,), F32), jnp.zeros((d,), F32))
    w1, b1 = fold(pp['w1'], pp['b1'], s0, t0, pp['bn1'])
    w2, b2 = fold(pp['w2'], pp['b2'], *ident(64), pp['bn2'])
    w3, b3 = fold(pp['w3'], pp['b3'], *ident(128), pp['bn3'])
    return (w1, b1, w2, b2, w3, b3, pp['w4'], pp['b4'])


def build_attn_params(key, fea_compre):
    ks = jax.random.split(key, 16)
    p = {}
    p['wq'], p['bq'] = _dense(ks[0], HID, HID)
    p['wk'], p['bk'] = _dense(ks[1], HID, HID)
    p['wv'], p['bv'] = _dense(ks[2], HID, HID)
    p['wo'], p['bo'] = _dense(ks[3], HID, HID)
    p['g1'] = 1.0 + 0.1 * jax.random.normal(ks[4], (1, HID), F32)
    p['be1'] = 0.1 * jax.random.normal(ks[5], (1, HID), F32)
    p['wf1'], p['bf1'] = _dense(ks[6], HID, PF)
    p['wf2'], p['bf2'] = _dense(ks[7], PF, HID)
    p['g2'] = 1.0 + 0.1 * jax.random.normal(ks[8], (1, HID), F32)
    p['be2'] = 0.1 * jax.random.normal(ks[9], (1, HID), F32)
    p['wc1'], p['bc1'] = _dense(ks[10], 2 * HID, HID)     # comp_attn Linear(512,256)
    p['wc2'], p['bc2'] = _dense(ks[11], HID, 128)         # comp_attn Linear(256,128)
    p['wfc'], p['bfc'] = _dense(ks[12], 128, fea_compre)  # fea_compression
    return p


# ---------------------------------------------------------------------------
# Full cylinder_fea forward
# ---------------------------------------------------------------------------
def cylinder_fea_forward(pt_fea, xy_ind, fusion_dict, params, fea_compre, out_pt_fea_dim):
    # F.pad(xy_ind[i], (1, 0), value=i): prepend the batch index column.
    pt_ind = [jnp.concatenate(
                  [jnp.full((xy.shape[0], 1), i, xy.dtype), xy], axis=1)
              for i, xy in enumerate(xy_ind)]
    cat_pt_ind = jnp.concatenate(pt_ind, axis=0)
    cat_pt_fea = jnp.concatenate(pt_fea, axis=0)
    cat_sam_fea = jnp.concatenate(fusion_dict['segfea'], axis=0)   # [N, 3, 256]
    cat_pix_fea = jnp.concatenate(fusion_dict['pixfea'], axis=0)   # [N, 256]

    # point MLP (Pallas kernel 1), bf16 output
    cat_mlp_fea = ppmodel_forward(cat_pt_fea, params['pp_folded'], out_pt_fea_dim)

    # TODO(synk): torch.unique / torch_scatter.scatter_max are data-dependent shape ops;
    # implemented with eager jnp.unique + a single fused jax.ops.segment_max.  In a
    # production pipeline the unique-voxel count should be bucket-padded (e.g. to the
    # next multiple of 4096) so segment_max and the cross-attention pallas_call do not
    # retrace/recompile per scan.
    unq, unq_inv, unq_cnt = jnp.unique(
        cat_pt_ind, axis=0, return_inverse=True, return_counts=True)
    unq_inv = unq_inv.reshape(-1)
    m = int(unq.shape[0])

    # One fused scatter-max over [N, 5*HID] bf16 instead of five separate ones.
    fused = jnp.concatenate(
        [cat_mlp_fea,
         cat_pix_fea.astype(BF16),
         cat_sam_fea[:, 0, :].astype(BF16),
         cat_sam_fea[:, 1, :].astype(BF16),
         cat_sam_fea[:, 2, :].astype(BF16)], axis=1)
    pooled_all = jax.ops.segment_max(fused, unq_inv, num_segments=m)
    ori_cylinder_data = pooled_all[:, 0 * HID:1 * HID]
    pix_pooled = pooled_all[:, 1 * HID:2 * HID]
    seg_pooled_1 = pooled_all[:, 2 * HID:3 * HID]
    seg_pooled_2 = pooled_all[:, 3 * HID:4 * HID]
    seg_pooled_3 = pooled_all[:, 4 * HID:5 * HID]

    # fused cross-attention + comp_attn + fea_compression (Pallas kernel 2)
    processed = cross_attention_forward(
        ori_cylinder_data, pix_pooled, seg_pooled_1, seg_pooled_2, seg_pooled_3,
        params['attn'], fea_compre)

    # pooled returned in f32 to match the torch module's output dtype.
    pooled = [seg_pooled_1.astype(F32), seg_pooled_2.astype(F32),
              seg_pooled_3.astype(F32), pix_pooled.astype(F32)]
    return unq, processed, pooled, unq_inv


# ---------------------------------------------------------------------------
# Pure-JAX reference (used only for a correctness check in __main__)
# ---------------------------------------------------------------------------
def _ln_ref(x, g, b):
    mu = jnp.mean(x, axis=-1, keepdims=True)
    var = jnp.mean((x - mu) ** 2, axis=-1, keepdims=True)
    return (x - mu) * jax.lax.rsqrt(var + LN_EPS) * g + b


def _ppmodel_ref(x, pp):
    def bn(v, p):
        g, b, rm, rv = p
        return (v - rm) / jnp.sqrt(rv + BN_EPS) * g + b
    x = bn(x, pp['bn0'])
    x = x @ pp['w1'] + pp['b1']
    x = jnp.maximum(bn(x, pp['bn1']), 0.0)
    x = x @ pp['w2'] + pp['b2']
    x = jnp.maximum(bn(x, pp['bn2']), 0.0)
    x = x @ pp['w3'] + pp['b3']
    x = jnp.maximum(bn(x, pp['bn3']), 0.0)
    return x @ pp['w4'] + pp['b4']


def _attn_ref(trg, src, p):
    q = trg @ p['wq'] + p['bq']
    k = jnp.einsum('msd,de->mse', src, p['wk']) + p['bk']
    v = jnp.einsum('msd,de->mse', src, p['wv']) + p['bv']
    scores = jnp.einsum('md,msd->ms', q, k) / (float(HID) ** 0.5)
    w = jax.nn.softmax(scores, axis=-1)
    attn = jnp.einsum('ms,msd->md', w, v) @ p['wo'] + p['bo']
    x = _ln_ref(trg + attn, p['g1'], p['be1'])
    h = jnp.maximum(x @ p['wf1'] + p['bf1'], 0.0) @ p['wf2'] + p['bf2']
    y = _ln_ref(x + h, p['g2'], p['be2'])
    cat = jnp.concatenate([trg, y], axis=-1)
    c = jnp.maximum(cat @ p['wc1'] + p['bc1'], 0.0) @ p['wc2'] + p['bc2']
    return jnp.maximum(c @ p['wfc'] + p['bfc'], 0.0)


def _reference_processed(pt_fea, xy_ind, fusion_dict, params):
    pt_ind = [jnp.concatenate(
                  [jnp.full((xy.shape[0], 1), i, xy.dtype), xy], axis=1)
              for i, xy in enumerate(xy_ind)]
    cat_pt_ind = jnp.concatenate(pt_ind, axis=0)
    cat_pt_fea = jnp.concatenate(pt_fea, axis=0)
    cat_sam = jnp.concatenate(fusion_dict['segfea'], axis=0)
    cat_pix = jnp.concatenate(fusion_dict['pixfea'], axis=0)
    mlp = _ppmodel_ref(cat_pt_fea, params['pp'])
    unq, unq_inv, _ = jnp.unique(cat_pt_ind, axis=0,
                                 return_inverse=True, return_counts=True)
    unq_inv = unq_inv.reshape(-1)
    m = int(unq.shape[0])
    smax = lambda d: jax.ops.segment_max(d, unq_inv, num_segments=m)
    ori = smax(mlp)
    src = jnp.stack([smax(cat_pix), smax(cat_sam[:, 0, :]),
                     smax(cat_sam[:, 1, :]), smax(cat_sam[:, 2, :])], axis=1)
    return _attn_ref(ori, src, params['attn'])


if __name__ == "__main__":
    key = jax.random.PRNGKey(0)
    batch = 2
    npts = [40, 56]
    fea_dim = 3
    out_pt_fea_dim = HID        # must equal the attention hidden dim (256) per the module
    fea_compre = 16

    ks = jax.random.split(key, 10)
    pt_fea = [jax.random.normal(ks[i], (npts[i], fea_dim), F32) for i in range(batch)]
    xy_ind = [jax.random.randint(ks[2 + i], (npts[i], 2), 0, 4) for i in range(batch)]
    fusion_dict = {
        'segfea': [jax.random.normal(ks[4 + i], (npts[i], 3, HID), F32) for i in range(batch)],
        'pixfea': [jax.random.normal(ks[6 + i], (npts[i], HID), F32) for i in range(batch)],
    }

    pp = build_ppmodel_params(ks[8], fea_dim, out_pt_fea_dim)
    params = {
        'pp': pp,
        'pp_folded': fold_ppmodel(pp),
        'attn': build_attn_params(ks[9], fea_compre),
    }

    unq, processed, pooled, unq_inv = cylinder_fea_forward(
        pt_fea, xy_ind, fusion_dict, params, fea_compre, out_pt_fea_dim)
    jax.block_until_ready(processed)

    # f32 reference at full precision (kernels stream bf16 and run bf16 MXU matmuls with
    # f32 accumulation, so tolerances reflect bf16 rounding).
    with jax.default_matmul_precision("highest"):
        ref = _reference_processed(pt_fea, xy_ind, fusion_dict, params)
    np.testing.assert_allclose(np.asarray(processed), np.asarray(ref),
                               rtol=8e-2, atol=4e-2)
    assert processed.shape == (int(unq.shape[0]), fea_compre)
    print("KERNEL_OK")
</pallas_src>

<mosaic_0001>
module attributes {stable_mosaic.version = 11 : i64} {
  func.func @ppmodel_kernel(%arg0: i32, %arg1: memref<96x3xf32, #tpu.memory_space<vmem>>, %arg2: memref<3x64xf32, #tpu.memory_space<vmem>>, %arg3: memref<1x64xf32, #tpu.memory_space<vmem>>, %arg4: memref<64x128xbf16, #tpu.memory_space<vmem>>, %arg5: memref<1x128xf32, #tpu.memory_space<vmem>>, %arg6: memref<128x256xbf16, #tpu.memory_space<vmem>>, %arg7: memref<1x256xf32, #tpu.memory_space<vmem>>, %arg8: memref<256x256xbf16, #tpu.memory_space<vmem>>, %arg9: memref<1x256xf32, #tpu.memory_space<vmem>>, %arg10: memref<96x256xbf16, #tpu.memory_space<vmem>>) attributes {dimension_semantics = [#tpu.dimension_semantics<parallel>], iteration_bounds = array<i64: 1>, scalar_prefetch = 0 : i64, scratch_operands = 0 : i64, tpu.core_type = #tpu.core_type<tc>, window_params = [{transform_indices = @transform_0, window_bounds = array<i64: 96, 3>}, {pipeline_mode = #tpu.pipeline_mode<synchronous>, transform_indices = @transform_1, window_bounds = array<i64: 3, 64>}, {pipeline_mode = #tpu.pipeline_mode<synchronous>, transform_indices = @transform_2, window_bounds = array<i64: 1, 64>}, {pipeline_mode = #tpu.pipeline_mode<synchronous>, transform_indices = @transform_3, window_bounds = array<i64: 64, 128>}, {pipeline_mode = #tpu.pipeline_mode<synchronous>, transform_indices = @transform_4, window_bounds = array<i64: 1, 128>}, {pipeline_mode = #tpu.pipeline_mode<synchronous>, transform_indices = @transform_5, window_bounds = array<i64: 128, 256>}, {pipeline_mode = #tpu.pipeline_mode<synchronous>, transform_indices = @transform_6, window_bounds = array<i64: 1, 256>}, {pipeline_mode = #tpu.pipeline_mode<synchronous>, transform_indices = @transform_7, window_bounds = array<i64: 256, 256>}, {pipeline_mode = #tpu.pipeline_mode<synchronous>, transform_indices = @transform_8, window_bounds = array<i64: 1, 256>}, {transform_indices = @transform_9, window_bounds = array<i64: 96, 256>}]} {
    %c0 = arith.constant 0 : index
    %c0_0 = arith.constant 0 : index
    %0 = vector.load %arg1[%c0, %c0_0] : memref<96x3xf32, #tpu.memory_space<vmem>>, vector<96x3xf32>
    %c0_1 = arith.constant 0 : index
    %c0_2 = arith.constant 0 : index
    %1 = vector.load %arg2[%c0_1, %c0_2] : memref<3x64xf32, #tpu.memory_space<vmem>>, vector<3x64xf32>
    %c0_3 = arith.constant 0 : index
    %c0_4 = arith.constant 0 : index
    %2 = vector.load %arg3[%c0_3, %c0_4] : memref<1x64xf32, #tpu.memory_space<vmem>>, vector<1x64xf32>
    %3 = vector.extract_strided_slice %0 {offsets = [0, 0], sizes = [96, 1], strides = [1, 1]} : vector<96x3xf32> to vector<96x1xf32>
    %4 = vector.extract_strided_slice %1 {offsets = [0, 0], sizes = [1, 64], strides = [1, 1]} : vector<3x64xf32> to vector<1x64xf32>
    %5 = vector.broadcast %3 : vector<96x1xf32> to vector<96x64xf32>
    %6 = vector.broadcast %4 : vector<1x64xf32> to vector<96x64xf32>
    %7 = arith.mulf %5, %6 : vector<96x64xf32>
    %8 = vector.broadcast %2 : vector<1x64xf32> to vector<96x64xf32>
    %9 = arith.addf %8, %7 : vector<96x64xf32>
    %10 = vector.extract_strided_slice %0 {offsets = [0, 1], sizes = [96, 1], strides = [1, 1]} : vector<96x3xf32> to vector<96x1xf32>
    %11 = vector.extract_strided_slice %1 {offsets = [1, 0], sizes = [1, 64], strides = [1, 1]} : vector<3x64xf32> to vector<1x64xf32>
    %12 = vector.broadcast %10 : vector<96x1xf32> to vector<96x64xf32>
    %13 = vector.broadcast %11 : vector<1x64xf32> to vector<96x64xf32>
    %14 = arith.mulf %12, %13 : vector<96x64xf32>
    %15 = arith.addf %9, %14 : vector<96x64xf32>
    %16 = vector.extract_strided_slice %0 {offsets = [0, 2], sizes = [96, 1], strides = [1, 1]} : vector<96x3xf32> to vector<96x1xf32>
    %17 = vector.extract_strided_slice %1 {offsets = [2, 0], sizes = [1, 64], strides = [1, 1]} : vector<3x64xf32> to vector<1x64xf32>
    %18 = vector.broadcast %16 : vector<96x1xf32> to vector<96x64xf32>
    %19 = vector.broadcast %17 : vector<1x64xf32> to vector<96x64xf32>
    %20 = arith.mulf %18, %19 : vector<96x64xf32>
    %21 = arith.addf %15, %20 : vector<96x64xf32>
    %cst = arith.constant 0.000000e+00 : f32
    %22 = vector.broadcast %cst : f32 to vector<96x64xf32>
    %23 = arith.maximumf %21, %22 : vector<96x64xf32>
    %24 = arith.truncf %23 : vector<96x64xf32> to vector<96x64xbf16>
    %c0_5 = arith.constant 0 : index
    %c0_6 = arith.constant 0 : index
    %25 = vector.load %arg4[%c0_5, %c0_6] : memref<64x128xbf16, #tpu.memory_space<vmem>>, vector<64x128xbf16>
    %cst_7 = arith.constant dense<0.000000e+00> : vector<96x128xf32>
    %26 = tpu.matmul %24, %25, %cst_7 {dimension_numbers = #tpu.dot_dimension_numbers<[1], [0], [0], [1], [0, 0, 1, 1], [], []>} : vector<96x64xbf16>, vector<64x128xbf16>, vector<96x128xf32> -> vector<96x128xf32>
    %c0_8 = arith.constant 0 : index
    %c0_9 = arith.constant 0 : index
    %27 = vector.load %arg5[%c0_8, %c0_9] : memref<1x128xf32, #tpu.memory_space<vmem>>, vector<1x128xf32>
    %28 = vector.broadcast %27 : vector<1x128xf32> to vector<96x128xf32>
    %29 = arith.addf %26, %28 : vector<96x128xf32>
    %cst_10 = arith.constant 0.000000e+00 : f32
    %30 = vector.broadcast %cst_10 : f32 to vector<96x128xf32>
    %31 = arith.maximumf %29, %30 : vector<96x128xf32>
    %32 = arith.truncf %31 : vector<96x128xf32> to vector<96x128xbf16>
    %c0_11 = arith.constant 0 : index
    %c0_12 = arith.constant 0 : index
    %33 = vector.load %arg6[%c0_11, %c0_12] : memref<128x256xbf16, #tpu.memory_space<vmem>>, vector<128x256xbf16>
    %cst_13 = arith.constant dense<0.000000e+00> : vector<96x256xf32>
    %34 = tpu.matmul %32, %33, %cst_13 {dimension_numbers = #tpu.dot_dimension_numbers<[1], [0], [0], [1], [0, 0, 1, 1], [], []>} : vector<96x128xbf16>, vector<128x256xbf16>, vector<96x256xf32> -> vector<96x256xf32>
    %c0_14 = arith.constant 0 : index
    %c0_15 = arith.constant 0 : index
    %35 = vector.load %arg7[%c0_14, %c0_15] : memref<1x256xf32, #tpu.memory_space<vmem>>, vector<1x256xf32>
    %36 = vector.broadcast %35 : vector<1x256xf32> to vector<96x256xf32>
    %37 = arith.addf %34, %36 : vector<96x256xf32>
    %cst_16 = arith.constant 0.000000e+00 : f32
    %38 = vector.broadcast %cst_16 : f32 to vector<96x256xf32>
    %39 = arith.maximumf %37, %38 : vector<96x256xf32>
    %40 = arith.truncf %39 : vector<96x256xf32> to vector<96x256xbf16>
    %c0_17 = arith.constant 0 : index
    %c0_18 = arith.constant 0 : index
    %41 = vector.load %arg8[%c0_17, %c0_18] : memref<256x256xbf16, #tpu.memory_space<vmem>>, vector<256x256xbf16>
    %cst_19 = arith.constant dense<0.000000e+00> : vector<96x256xf32>
    %42 = tpu.matmul %40, %41, %cst_19 {dimension_numbers = #tpu.dot_dimension_numbers<[1], [0], [0], [1], [0, 0, 1, 1], [], []>} : vector<96x256xbf16>, vector<256x256xbf16>, vector<96x256xf32> -> vector<96x256xf32>
    %c0_20 = arith.constant 0 : index
    %c0_21 = arith.constant 0 : index
    %43 = vector.load %arg9[%c0_20, %c0_21] : memref<1x256xf32, #tpu.memory_space<vmem>>, vector<1x256xf32>
    %44 = vector.broadcast %43 : vector<1x256xf32> to vector<96x256xf32>
    %45 = arith.addf %42, %44 : vector<96x256xf32>
    %46 = arith.truncf %45 : vector<96x256xf32> to vector<96x256xbf16>
    %c0_22 = arith.constant 0 : index
    %c0_23 = arith.constant 0 : index
    %47 = vector.load %arg10[%c0_22, %c0_23] : memref<96x256xbf16, #tpu.memory_space<vmem>>, vector<96x256xbf16>
    tpu.vector_store %arg10[%c0_22, %c0_23], %46 {strides = array<i32>} : memref<96x256xbf16, #tpu.memory_space<vmem>>, vector<96x256xbf16>,
    return
  }
  func.func @transform_0(%arg0: i32) -> (i32, i32) {
    %c0_i32 = arith.constant 0 : i32
    %c0_i32_0 = arith.constant 0 : i32
    return %arg0, %c0_i32 : i32, i32
  }
  func.func @transform_1(%arg0: i32) -> (i32, i32) {
    %c0_i32 = arith.constant 0 : i32
    %c0_i32_0 = arith.constant 0 : i32
    %c0_i32_1 = arith.constant 0 : i32
    return %c0_i32, %c0_i32_0 : i32, i32
  }
  func.func @transform_2(%arg0: i32) -> (i32, i32) {
    %c0_i32 = arith.constant 0 : i32
    %c0_i32_0 = arith.constant 0 : i32
    %c0_i32_1 = arith.constant 0 : i32
    return %c0_i32, %c0_i32_0 : i32, i32
  }
  func.func @transform_3(%arg0: i32) -> (i32, i32) {
    %c0_i32 = arith.constant 0 : i32
    %c0_i32_0 = arith.constant 0 : i32
    %c0_i32_1 = arith.constant 0 : i32
    return %c0_i32, %c0_i32_0 : i32, i32
  }
  func.func @transform_4(%arg0: i32) -> (i32, i32) {
    %c0_i32 = arith.constant 0 : i32
    %c0_i32_0 = arith.constant 0 : i32
    %c0_i32_1 = arith.constant 0 : i32
    return %c0_i32, %c0_i32_0 : i32, i32
  }
  func.func @transform_5(%arg0: i32) -> (i32, i32) {
    %c0_i32 = arith.constant 0 : i32
    %c0_i32_0 = arith.constant 0 : i32
    %c0_i32_1 = arith.constant 0 : i32
    return %c0_i32, %c0_i32_0 : i32, i32
  }
  func.func @transform_6(%arg0: i32) -> (i32, i32) {
    %c0_i32 = arith.constant 0 : i32
    %c0_i32_0 = arith.constant 0 : i32
    %c0_i32_1 = arith.constant 0 : i32
    return %c0_i32, %c0_i32_0 : i32, i32
  }
  func.func @transform_7(%arg0: i32) -> (i32, i32) {
    %c0_i32 = arith.constant 0 : i32
    %c0_i32_0 = arith.constant 0 : i32
    %c0_i32_1 = arith.constant 0 : i32
    return %c0_i32, %c0_i32_0 : i32, i32
  }
  func.func @transform_8(%arg0: i32) -> (i32, i32) {
    %c0_i32 = arith.constant 0 : i32
    %c0_i32_0 = arith.constant 0 : i32
    %c0_i32_1 = arith.constant 0 : i32
    return %c0_i32, %c0_i32_0 : i32, i32
  }
  func.func @transform_9(%arg0: i32) -> (i32, i32) {
    %c0_i32 = arith.constant 0 : i32
    %c0_i32_0 = arith.constant 0 : i32
    return %arg0, %c0_i32 : i32, i32
  }
}

</mosaic_0001>

<llo_original>
// kernel: tpu_custom_call.1
$region0: #{tpu_custom_call.1}
  #allocation0 [shape = 'u32[]', space=smem, size = 0x4, offset = 0x4, fixed_abs, tag = 'smem constant byte address 0x4 - core index']
  #allocation1 [shape = 'u32[72,128]{1,0:T(1,128)}', space=vmem, size = 0x9000, scoped, tag = 'internal scratch']
  %s0 = inlined_call_operand.vmem [shape: f32[96,3], index: 0, kind: input, shape index: {}]
  %s1 = inlined_call_operand.vmem [shape: f32[3,64], index: 1, kind: input, shape index: {}]
  %s2 = inlined_call_operand.vmem [shape: f32[1,64], index: 2, kind: input, shape index: {}]
  %s3 = inlined_call_operand.vmem [shape: bf16[64,128], index: 3, kind: input, shape index: {}]
  %s4 = inlined_call_operand.vmem [shape: f32[1,128], index: 4, kind: input, shape index: {}]
  %s5 = inlined_call_operand.hbm [shape: bf16[128,256], index: 5, kind: input, shape index: {}]
  %s6 = inlined_call_operand.vmem [shape: f32[1,256], index: 6, kind: input, shape index: {}]
  %s7 = inlined_call_operand.hbm [shape: bf16[256,256], index: 7, kind: input, shape index: {}]
  %s8 = inlined_call_operand.vmem [shape: f32[1,256], index: 8, kind: input, shape index: {}]
  %s9 = inlined_call_operand.hbm [shape: bf16[96,256], index: 9, kind: output, shape index: {}]
  %s10 = sld [smem:[#allocation0]]
  $region54: #{tpu_custom_call.1} parent=0
    _
  %s12 = ssub.s32 1, %s10
  %s13 = scalar_select 0, %s12, %s10
  $region1: #{tpu_custom_call.1} parent=0
    #allocation2 [shape = 'u8[65536]{0}', space=vmem, size = 0x10000, scoped, tag = 'input window, operand 5, single buffered']
    #allocation3 [shape = 's32[1]{0}', space=sflag, size = 0x4, scoped, tag = 'scoped memory for tpu_custom_call.1']
    #allocation4 [shape = 's32[1]{0}', space=sflag, size = 0x4, scoped, tag = 'scoped memory for tpu_custom_call.1']
    #allocation5 [shape = 'u8[131072]{0}', space=vmem, size = 0x20000, scoped, tag = 'input window, operand 7, single buffered']
    #allocation6 [shape = 's32[1]{0}', space=sflag, size = 0x4, scoped, tag = 'scoped memory for tpu_custom_call.1']
    #allocation7 [shape = 'u8[49152]{0}', space=vmem, size = 0xc000, scoped, tag = 'output window, operand 0, single buffered']
    %14 = vsyncpa [#allocation3], 0
    %15 = vsyncpa [#allocation6], 0
    %16 = vsyncpa [#allocation4], 0
    // Predicated region
    $region2: #{tpu_custom_call.1} parent=1 // pred_check
      _
    $region3: #{tpu_custom_call.1} parent=1 // pred_check_branch
      %18 = sbr.rel (0) target = $region5
    $region4: #{tpu_custom_call.1} parent=1 // pred_region
      _
    $region5: #{tpu_custom_call.1} parent=1 // pred_fallthru
      _
    // Predicated region
    $region6: #{tpu_custom_call.1} parent=1 // pred_check
      _
    $region7: #{tpu_custom_call.1} parent=1 // pred_check_branch
      %20 = sbr.rel (0) target = $region9
    $region8: #{tpu_custom_call.1} parent=1 // pred_region
      _
    $region9: #{tpu_custom_call.1} parent=1 // pred_fallthru
      _
    // Predicated region
    $region10: #{tpu_custom_call.1} parent=1 // pred_check
      _
    $region11: #{tpu_custom_call.1} parent=1 // pred_check_branch
      %22 = sbr.rel (0) target = $region13
    $region12: #{tpu_custom_call.1} parent=1 // pred_region
      _
    $region13: #{tpu_custom_call.1} parent=1 // pred_fallthru
      _
    // Predicated region
    $region14: #{tpu_custom_call.1} parent=1 // pred_check
      _
    $region15: #{tpu_custom_call.1} parent=1 // pred_check_branch
      %24 = sbr.rel (0) target = $region17
    $region16: #{tpu_custom_call.1} parent=1 // pred_region
      _
    $region17: #{tpu_custom_call.1} parent=1 // pred_fallthru
      _
    // Predicated region
    $region18: #{tpu_custom_call.1} parent=1 // pred_check
      _
    $region19: #{tpu_custom_call.1} parent=1 // pred_check_branch
      %26 = sbr.rel (0) target = $region21
    $region20: #{tpu_custom_call.1} parent=1 // pred_region
      _
    $region21: #{tpu_custom_call.1} parent=1 // pred_fallthru
      _
    // Predicated region
    $region22: #{tpu_custom_call.1} parent=1 // pred_check
      _
    $region23: #{tpu_custom_call.1} parent=1 // pred_check_branch
      %28 = sbr.rel (0) target = $region25
    $region24: #{tpu_custom_call.1} parent=1 // pred_region
      %30 = vsyncadd [#allocation3], 0
      %s31 = sshll.u32 %s5, 4
      %s32 = int_to_ptr.hbm [resolvable:$true] %s31
      %s33 = sshll.u32 [#allocation2], 4
      %s34 = int_to_ptr.vmem [resolvable:$true] %s33
      %39 = dma.hbm_to_vmem [thread:$0]  %s32, 2048, %s34, [#allocation3], 128, 128, 8
    $region25: #{tpu_custom_call.1} parent=1 // pred_fallthru
      _
    // Predicated region
    $region26: #{tpu_custom_call.1} parent=1 // pred_check
      _
    $region27: #{tpu_custom_call.1} parent=1 // pred_check_branch
      %41 = sbr.rel (0) target = $region29
    $region28: #{tpu_custom_call.1} parent=1 // pred_region
      _
    $region29: #{tpu_custom_call.1} parent=1 // pred_fallthru
      _
    // Predicated region
    $region30: #{tpu_custom_call.1} parent=1 // pred_check
      _
    $region31: #{tpu_custom_call.1} parent=1 // pred_check_branch
      %43 = sbr.rel (0) target = $region33
    $region32: #{tpu_custom_call.1} parent=1 // pred_region
      %45 = vsyncadd [#allocation6], 0
      %s46 = sshll.u32 %s7, 4
      %s47 = int_to_ptr.hbm [resolvable:$true] %s46
      %s48 = sshll.u32 [#allocation5], 4
      %s49 = int_to_ptr.vmem [resolvable:$true] %s48
      %54 = dma.hbm_to_vmem [thread:$0]  %s47, 4096, %s49, [#allocation6], 128, 128, 8
    $region33: #{tpu_custom_call.1} parent=1 // pred_fallthru
      _
    // Predicated region
    $region34: #{tpu_custom_call.1} parent=1 // pred_check
      _
    $region35: #{tpu_custom_call.1} parent=1 // pred_check_branch
      %56 = sbr.rel (0) target = $region37
    $region36: #{tpu_custom_call.1} parent=1 // pred_region
      _
    $region37: #{tpu_custom_call.1} parent=1 // pred_fallthru
      _
    // Predicated region
    $region38: #{tpu_custom_call.1} parent=1 // pred_check
      _
    $region39: #{tpu_custom_call.1} parent=1 // pred_check_branch
      %58 = sbr.rel (0) target = $region41
    $region40: #{tpu_custom_call.1} parent=1 // pred_region
      %60 = dma.done [#allocation3], 2048
    $region41: #{tpu_custom_call.1} parent=1 // pred_fallthru
      _
    // Predicated region
    $region42: #{tpu_custom_call.1} parent=1 // pred_check
      _
    $region43: #{tpu_custom_call.1} parent=1 // pred_check_branch
      %62 = sbr.rel (0) target = $region45
    $region44: #{tpu_custom_call.1} parent=1 // pred_region
      %64 = dma.done [#allocation6], 4096
    $region45: #{tpu_custom_call.1} parent=1 // pred_fallthru
      _
    %v66 = vld [vmem:[%s0] sm:$0xff]
    %v67 = vld [vmem:[%s0 + $0x8] sm:$0xff]
    %v68 = vld [vmem:[%s0 + $0x10] sm:$0xff]
    %v69 = vld [vmem:[%s0 + $0x18] sm:$0xff]
    %v70 = vld [vmem:[%s0 + $0x20] sm:$0xff]
    %v71 = vld [vmem:[%s0 + $0x28] sm:$0xff]
    %v72 = vld [vmem:[%s0 + $0x30] sm:$0xff]
    %v73 = vld [vmem:[%s0 + $0x38] sm:$0xff]
    %v74 = vld [vmem:[%s0 + $0x40] sm:$0xff]
    %v75 = vld [vmem:[%s0 + $0x48] sm:$0xff]
    %v76 = vld [vmem:[%s0 + $0x50] sm:$0xff]
    %v77 = vld [vmem:[%s0 + $0x58] sm:$0xff]
    %v78 = vld [vmem:[%s1] sm:$0x7]
    %v79 = vld [vmem:[%s2] sm:$0x1]
    %81 = vset.pattern.permute.xlu0 0
    %82 = vperm.xlu0 %81, %v66
    %v83 = vpop.permute.xlu0 %82
    %86 = vset.pattern.permute.xlu0 0
    %87 = vperm.xlu0 %86, %v67
    %v88 = vpop.permute.xlu0 %87
    %91 = vset.pattern.permute.xlu0 0
    %92 = vperm.xlu0 %91, %v68
    %v93 = vpop.permute.xlu0 %92
    %96 = vset.pattern.permute.xlu0 0
    %97 = vperm.xlu0 %96, %v69
    %v98 = vpop.permute.xlu0 %97
    %101 = vset.pattern.permute.xlu0 0
    %102 = vperm.xlu0 %101, %v70
    %v103 = vpop.permute.xlu0 %102
    %106 = vset.pattern.permute.xlu0 0
    %107 = vperm.xlu0 %106, %v71
    %v108 = vpop.permute.xlu0 %107
    %111 = vset.pattern.permute.xlu0 0
    %112 = vperm.xlu0 %111, %v72
    %v113 = vpop.permute.xlu0 %112
    %116 = vset.pattern.permute.xlu0 0
    %117 = vperm.xlu0 %116, %v73
    %v118 = vpop.permute.xlu0 %117
    %121 = vset.pattern.permute.xlu0 0
    %122 = vperm.xlu0 %121, %v74
    %v123 = vpop.permute.xlu0 %122
    %126 = vset.pattern.permute.xlu0 0
    %127 = vperm.xlu0 %126, %v75
    %v128 = vpop.permute.xlu0 %127
    %131 = vset.pattern.permute.xlu0 0
    %132 = vperm.xlu0 %131, %v76
    %v133 = vpop.permute.xlu0 %132
    %136 = vset.pattern.permute.xlu0 0
    %137 = vperm.xlu0 %136, %v77
    %v138 = vpop.permute.xlu0 %137
    %v140 = vperm.slane %v78, 0
    %v141 = vmul.f32 %v83, %v140
    %v142 = vmul.f32 %v88, %v140
    %v143 = vmul.f32 %v93, %v140
    %v144 = vmul.f32 %v98, %v140
    %v145 = vmul.f32 %v103, %v140
    %v146 = vmul.f32 %v108, %v140
    %v147 = vmul.f32 %v113, %v140
    %v148 = vmul.f32 %v118, %v140
    %v149 = vmul.f32 %v123, %v140
    %v150 = vmul.f32 %v128, %v140
    %v151 = vmul.f32 %v133, %v140
    %v152 = vmul.f32 %v138, %v140
    %v154 = vperm.slane %v79, 0
    %v156 = vadd.f32 %v154, %v141
    %v157 = vadd.f32 %v154, %v142
    %v158 = vadd.f32 %v154, %v143
    %v159 = vadd.f32 %v154, %v144
    %v160 = vadd.f32 %v154, %v145
    %v161 = vadd.f32 %v154, %v146
    %v162 = vadd.f32 %v154, %v147
    %v163 = vadd.f32 %v154, %v148
    %v164 = vadd.f32 %v154, %v149
    %v165 = vadd.f32 %v154, %v150
    %v166 = vadd.f32 %v154, %v151
    %v167 = vadd.f32 %v154, %v152
    %168 = vset.pattern.permute.xlu0 1
    %169 = vperm.xlu0 %168, %v66
    %v170 = vpop.permute.xlu0 %169
    %172 = vset.pattern.permute.xlu0 1
    %173 = vperm.xlu0 %172, %v67
    %v174 = vpop.permute.xlu0 %173
    %176 = vset.pattern.permute.xlu0 1
    %177 = vperm.xlu0 %176, %v68
    %v178 = vpop.permute.xlu0 %177
    %180 = vset.pattern.permute.xlu0 1
    %181 = vperm.xlu0 %180, %v69
    %v182 = vpop.permute.xlu0 %181
    %184 = vset.pattern.permute.xlu0 1
    %185 = vperm.xlu0 %184, %v70
    %v186 = vpop.permute.xlu0 %185
    %188 = vset.pattern.permute.xlu0 1
    %189 = vperm.xlu0 %188, %v71
    %v190 = vpop.permute.xlu0 %189
    %192 = vset.pattern.permute.xlu0 1
    %193 = vperm.xlu0 %192, %v72
    %v194 = vpop.permute.xlu0 %193
    %196 = vset.pattern.permute.xlu0 1
    %197 = vperm.xlu0 %196, %v73
    %v198 = vpop.permute.xlu0 %197
    %200 = vset.pattern.permute.xlu0 1
    %201 = vperm.xlu0 %200, %v74
    %v202 = vpop.permute.xlu0 %201
    %204 = vset.pattern.permute.xlu0 1
    %205 = vperm.xlu0 %204, %v75
    %v206 = vpop.permute.xlu0 %205
    %208 = vset.pattern.permute.xlu0 1
    %209 = vperm.xlu0 %208, %v76
    %v210 = vpop.permute.xlu0 %209
    %212 = vset.pattern.permute.xlu0 1
    %213 = vperm.xlu0 %212, %v77
    %v214 = vpop.permute.xlu0 %213
    %v216 = vperm.slane %v78, 1
    %v217 = vmul.f32 %v170, %v216
    %v218 = vmul.f32 %v174, %v216
    %v219 = vmul.f32 %v178, %v216
    %v220 = vmul.f32 %v182, %v216
    %v221 = vmul.f32 %v186, %v216
    %v222 = vmul.f32 %v190, %v216
    %v223 = vmul.f32 %v194, %v216
    %v224 = vmul.f32 %v198, %v216
    %v225 = vmul.f32 %v202, %v216
    %v226 = vmul.f32 %v206, %v216
    %v227 = vmul.f32 %v210, %v216
    %v228 = vmul.f32 %v214, %v216
    %v229 = vadd.f32 %v156, %v217
    %v230 = vadd.f32 %v157, %v218
    %v231 = vadd.f32 %v158, %v219
    %v232 = vadd.f32 %v159, %v220
    %v233 = vadd.f32 %v160, %v221
    %v234 = vadd.f32 %v161, %v222
    %v235 = vadd.f32 %v162, %v223
    %v236 = vadd.f32 %v163, %v224
    %v237 = vadd.f32 %v164, %v225
    %v238 = vadd.f32 %v165, %v226
    %v239 = vadd.f32 %v166, %v227
    %v240 = vadd.f32 %v167, %v228
    %241 = vset.pattern.permute.xlu0 2
    %242 = vperm.xlu0 %241, %v66
    %v243 = vpop.permute.xlu0 %242
    %245 = vset.pattern.permute.xlu0 2
    %246 = vperm.xlu0 %245, %v67
    %v247 = vpop.permute.xlu0 %246
    %249 = vset.pattern.permute.xlu0 2
    %250 = vperm.xlu0 %249, %v68
    %v251 = vpop.permute.xlu0 %250
    %253 = vset.pattern.permute.xlu0 2
    %254 = vperm.xlu0 %253, %v69
    %v255 = vpop.permute.xlu0 %254
    %257 = vset.pattern.permute.xlu0 2
    %258 = vperm.xlu0 %257, %v70
    %v259 = vpop.permute.xlu0 %258
    %261 = vset.pattern.permute.xlu0 2
    %262 = vperm.xlu0 %261, %v71
    %v263 = vpop.permute.xlu0 %262
    %265 = vset.pattern.permute.xlu0 2
    %266 = vperm.xlu0 %265, %v72
    %v267 = vpop.permute.xlu0 %266
    %269 = vset.pattern.permute.xlu0 2
    %270 = vperm.xlu0 %269, %v73
    %v271 = vpop.permute.xlu0 %270
    %273 = vset.pattern.permute.xlu0 2
    %274 = vperm.xlu0 %273, %v74
    %v275 = vpop.permute.xlu0 %274
    %277 = vset.pattern.permute.xlu0 2
    %278 = vperm.xlu0 %277, %v75
    %v279 = vpop.permute.xlu0 %278
    %281 = vset.pattern.permute.xlu0 2
    %282 = vperm.xlu0 %281, %v76
    %v283 = vpop.permute.xlu0 %282
    %285 = vset.pattern.permute.xlu0 2
    %286 = vperm.xlu0 %285, %v77
    %v287 = vpop.permute.xlu0 %286
    %v289 = vperm.slane %v78, 2
    %v290 = vmul.f32 %v243, %v289
    %v291 = vmul.f32 %v247, %v289
    %v292 = vmul.f32 %v251, %v289
    %v293 = vmul.f32 %v255, %v289
    %v294 = vmul.f32 %v259, %v289
    %v295 = vmul.f32 %v263, %v289
    %v296 = vmul.f32 %v267, %v289
    %v297 = vmul.f32 %v271, %v289
    %v298 = vmul.f32 %v275, %v289
    %v299 = vmul.f32 %v279, %v289
    %v300 = vmul.f32 %v283, %v289
    %v301 = vmul.f32 %v287, %v289
    %v302 = vadd.f32 %v229, %v290
    %v303 = vadd.f32 %v230, %v291
    %v304 = vadd.f32 %v231, %v292
    %v305 = vadd.f32 %v232, %v293
    %v306 = vadd.f32 %v233, %v294
    %v307 = vadd.f32 %v234, %v295
    %v308 = vadd.f32 %v235, %v296
    %v309 = vadd.f32 %v236, %v297
    %v310 = vadd.f32 %v237, %v298
    %v311 = vadd.f32 %v238, %v299
    %v312 = vadd.f32 %v239, %v300
    %v313 = vadd.f32 %v240, %v301
    %v314 = vmax.f32 %v302, 0.0
    %v315 = vmax.f32 %v303, 0.0
    %v316 = vmax.f32 %v304, 0.0
    %v317 = vmax.f32 %v305, 0.0
    %v318 = vmax.f32 %v306, 0.0
    %v319 = vmax.f32 %v307, 0.0
    %v320 = vmax.f32 %v308, 0.0
    %v321 = vmax.f32 %v309, 0.0
    %v322 = vmax.f32 %v310, 0.0
    %v323 = vmax.f32 %v311, 0.0
    %v324 = vmax.f32 %v312, 0.0
    %v325 = vmax.f32 %v313, 0.0
    %v326 = vpack.c.bf16 %v315, %v314
    %v327 = vpack.c.bf16 %v317, %v316
    %v328 = vpack.c.bf16 %v319, %v318
    %v329 = vpack.c.bf16 %v321, %v320
    %v330 = vpack.c.bf16 %v323, %v322
    %v331 = vpack.c.bf16 %v325, %v324
    %v332 = vld [vmem:[%s3] sm:$0xf]
    %v333 = vld [vmem:[%s3 + $0x4] sm:$0xf]
    %v334 = vld [vmem:[%s3 + $0x8] sm:$0xf]
    %v335 = vld [vmem:[%s3 + $0xc] sm:$0xf]
    %v336 = vld [vmem:[%s3 + $0x10] sm:$0xf]
    %v337 = vld [vmem:[%s3 + $0x14] sm:$0xf]
    %v338 = vld [vmem:[%s3 + $0x18] sm:$0xf]
    %v339 = vld [vmem:[%s3 + $0x1c] sm:$0xf]
    %v340 = vld [vmem:[%s4] sm:$0x1]
    %v342 = vperm.slane %v340, 0
    %v352 = vunpack.c.l.b16 %v332
    %v353 = vunpack.c.l.b16 %v333
    %v354 = vunpack.c.l.b16 %v334
    %v355 = vunpack.c.l.b16 %v335
    %v356 = vunpack.c.l.b16 %v336
    %v357 = vunpack.c.l.b16 %v337
    %v358 = vunpack.c.l.b16 %v338
    %v359 = vunpack.c.l.b16 %v339
    %v360 = vpack.c.b16 %v353, %v352
    %v361 = vpack.c.b16 %v355, %v354
    %v362 = vpack.c.b16 %v357, %v356
    %v363 = vpack.c.b16 %v359, %v358
    %vm368 = vcmask 523264
    %v370 = vsel %vm368, %v326, 0
    %v373 = vsel %vm368, %v327, 0
    %v376 = vsel %vm368, %v328, 0
    %v379 = vsel %vm368, %v329, 0
    %v382 = vsel %vm368, %v330, 0
    %v385 = vsel %vm368, %v331, 0
    %387 = vmatpush.bf16.msra.mxu0 0
    %388 = vmatpush.bf16.msra.mxu0 0
    %389 = vmatpush.bf16.msra.mxu0 0
    %390 = vmatpush.bf16.msra.mxu0 0
    %391 = vmatpush.bf16.msra.mxu0 %v363
    %392 = vmatpush.bf16.msra.mxu0 %v362
    %393 = vmatpush.bf16.msra.mxu0 %v361
    %394 = vmatpush.bf16.msra.mxu0 %v360
    %395 = vmatmul.bf16.gmra.mxu0 %v370
    %v396 = vpop.f32.mrf.mxu0
    %v397 = vadd.f32 %v342, %v396
    %v398 = vpop.f32.mrf.mxu0
    %v399 = vadd.f32 %v342, %v398
    %400 = vmatmul.bf16.gmra.mxu0 %v373
    %v401 = vpop.f32.mrf.mxu0
    %v402 = vadd.f32 %v342, %v401
    %v403 = vpop.f32.mrf.mxu0
    %v404 = vadd.f32 %v342, %v403
    %405 = vmatmul.bf16.gmra.mxu0 %v376
    %v406 = vpop.f32.mrf.mxu0
    %v407 = vadd.f32 %v342, %v406
    %v408 = vpop.f32.mrf.mxu0
    %v409 = vadd.f32 %v342, %v408
    %410 = vmatmul.bf16.gmra.mxu0 %v379
    %v411 = vpop.f32.mrf.mxu0
    %v412 = vadd.f32 %v342, %v411
    %v413 = vpop.f32.mrf.mxu0
    %v414 = vadd.f32 %v342, %v413
    %415 = vmatmul.bf16.gmra.mxu0 %v382
    %v416 = vpop.f32.mrf.mxu0
    %v417 = vadd.f32 %v342, %v416
    %v418 = vpop.f32.mrf.mxu0
    %v419 = vadd.f32 %v342, %v418
    %420 = vmatmul.bf16.gmra.mxu0 %v385
    %v421 = vpop.f32.mrf.mxu0
    %v422 = vadd.f32 %v342, %v421
    %v423 = vpop.f32.mrf.mxu0
    %v424 = vadd.f32 %v342, %v423
    %425 = vdwg.mxu0
    %v426 = vmax.f32 %v397, 0.0
    %v427 = vmax.f32 %v399, 0.0
    %v428 = vmax.f32 %v402, 0.0
    %v429 = vmax.f32 %v404, 0.0
    %v430 = vmax.f32 %v407, 0.0
    %v431 = vmax.f32 %v409, 0.0
    %v432 = vmax.f32 %v412, 0.0
    %v433 = vmax.f32 %v414, 0.0
    %v434 = vmax.f32 %v417, 0.0
    %v435 = vmax.f32 %v419, 0.0
    %v436 = vmax.f32 %v422, 0.0
    %v437 = vmax.f32 %v424, 0.0
    %v438 = vpack.c.bf16 %v427, %v426
    %v439 = vpack.c.bf16 %v429, %v428
    %v440 = vpack.c.bf16 %v431, %v430
    %v441 = vpack.c.bf16 %v433, %v432
    %v442 = vpack.c.bf16 %v435, %v434
    %v443 = vpack.c.bf16 %v437, %v436
    %v444 = vld [vmem:[#allocation2] sm:$0xff]
    %v445 = vld [vmem:[#allocation2 + $0x8] sm:$0xff]
    %v446 = vld [vmem:[#allocation2 + $0x10] sm:$0xff]
    %v447 = vld [vmem:[#allocation2 + $0x18] sm:$0xff]
    %v448 = vld [vmem:[#allocation2 + $0x20] sm:$0xff]
    %v449 = vld [vmem:[#allocation2 + $0x28] sm:$0xff]
    %v450 = vld [vmem:[#allocation2 + $0x30] sm:$0xff]
    %v451 = vld [vmem:[#allocation2 + $0x38] sm:$0xff]
    %v452 = vld [vmem:[#allocation2 + $0x40] sm:$0xff]
    %v453 = vld [vmem:[#allocation2 + $0x48] sm:$0xff]
    %v454 = vld [vmem:[#allocation2 + $0x50] sm:$0xff]
    %v455 = vld [vmem:[#allocation2 + $0x58] sm:$0xff]
    %v456 = vld [vmem:[#allocation2 + $0x60] sm:$0xff]
    %v457 = vld [vmem:[#allocation2 + $0x68] sm:$0xff]
    %v458 = vld [vmem:[#allocation2 + $0x70] sm:$0xff]
    %v459 = vld [vmem:[#allocation2 + $0x78] sm:$0xff]
    %v460 = vld [vmem:[%s6] sm:$0x3]
    %v462 = vperm.slane %v460, 0
    %v463 = vperm.slane %v460, 1
    %v482 = vunpack.c.l.b16 %v444
    %v483 = vunpack.c.h.b16 %v444
    %v484 = vunpack.c.l.b16 %v445
    %v485 = vunpack.c.h.b16 %v445
    %v486 = vunpack.c.l.b16 %v446
    %v487 = vunpack.c.h.b16 %v446
    %v488 = vunpack.c.l.b16 %v447
    %v489 = vunpack.c.h.b16 %v447
    %v490 = vunpack.c.l.b16 %v448
    %v491 = vunpack.c.h.b16 %v448
    %v492 = vunpack.c.l.b16 %v449
    %v493 = vunpack.c.h.b16 %v449
    %v494 = vunpack.c.l.b16 %v450
    %v495 = vunpack.c.h.b16 %v450
    %v496 = vunpack.c.l.b16 %v451
    %v497 = vunpack.c.h.b16 %v451
    %v498 = vunpack.c.l.b16 %v452
    %v499 = vunpack.c.h.b16 %v452
    %v500 = vunpack.c.l.b16 %v453
    %v501 = vunpack.c.h.b16 %v453
    %v502 = vunpack.c.l.b16 %v454
    %v503 = vunpack.c.h.b16 %v454
    %v504 = vunpack.c.l.b16 %v455
    %v505 = vunpack.c.h.b16 %v455
    %v506 = vunpack.c.l.b16 %v456
    %v507 = vunpack.c.h.b16 %v456
    %v508 = vunpack.c.l.b16 %v457
    %v509 = vunpack.c.h.b16 %v457
    %v510 = vunpack.c.l.b16 %v458
    %v511 = vunpack.c.h.b16 %v458
    %v512 = vunpack.c.l.b16 %v459
    %v513 = vunpack.c.h.b16 %v459
    %v514 = vpack.c.b16 %v484, %v482
    %v515 = vpack.c.b16 %v485, %v483
    %v516 = vpack.c.b16 %v488, %v486
    %v517 = vpack.c.b16 %v489, %v487
    %v518 = vpack.c.b16 %v492, %v490
    %v519 = vpack.c.b16 %v493, %v491
    %v520 = vpack.c.b16 %v496, %v494
    %v521 = vpack.c.b16 %v497, %v495
    %v522 = vpack.c.b16 %v500, %v498
    %v523 = vpack.c.b16 %v501, %v499
    %v524 = vpack.c.b16 %v504, %v502
    %v525 = vpack.c.b16 %v505, %v503
    %v526 = vpack.c.b16 %v508, %v506
    %v527 = vpack.c.b16 %v509, %v507
    %v528 = vpack.c.b16 %v512, %v510
    %v529 = vpack.c.b16 %v513, %v511
    %546 = vmatpush.bf16.msra.mxu0 %v528
    %547 = vmatpush.bf16.msra.mxu0 %v526
    %548 = vmatpush.bf16.msra.mxu0 %v524
    %549 = vmatpush.bf16.msra.mxu0 %v522
    %550 = vmatpush.bf16.msra.mxu0 %v520
    %551 = vmatpush.bf16.msra.mxu0 %v518
    %552 = vmatpush.bf16.msra.mxu0 %v516
    %553 = vmatpush.bf16.msra.mxu0 %v514
    %554 = vmatmul.bf16.gmra.mxu0 %v438
    %v555 = vpop.f32.mrf.mxu0
    %v556 = vadd.f32 %v462, %v555
    %v557 = vpop.f32.mrf.mxu0
    %v558 = vadd.f32 %v462, %v557
    %559 = vmatmul.bf16.gmra.mxu0 %v439
    %v560 = vpop.f32.mrf.mxu0
    %v561 = vadd.f32 %v462, %v560
    %v562 = vpop.f32.mrf.mxu0
    %v563 = vadd.f32 %v462, %v562
    %564 = vmatmul.bf16.gmra.mxu0 %v440
    %v565 = vpop.f32.mrf.mxu0
    %v566 = vadd.f32 %v462, %v565
    %v567 = vpop.f32.mrf.mxu0
    %v568 = vadd.f32 %v462, %v567
    %569 = vmatmul.bf16.gmra.mxu0 %v441
    %v570 = vpop.f32.mrf.mxu0
    %v571 = vadd.f32 %v462, %v570
    %v572 = vpop.f32.mrf.mxu0
    %v573 = vadd.f32 %v462, %v572
    %574 = vmatmul.bf16.gmra.mxu0 %v442
    %v575 = vpop.f32.mrf.mxu0
    %v576 = vadd.f32 %v462, %v575
    %v577 = vpop.f32.mrf.mxu0
    %v578 = vadd.f32 %v462, %v577
    %579 = vmatmul.bf16.gmra.mxu0 %v443
    %v580 = vpop.f32.mrf.mxu0
    %v581 = vadd.f32 %v462, %v580
    %v582 = vpop.f32.mrf.mxu0
    %v583 = vadd.f32 %v462, %v582
    %584 = vdwg.mxu0
    %585 = vmatpush.bf16.msra.mxu0 %v529
    %586 = vmatpush.bf16.msra.mxu0 %v527
    %587 = vmatpush.bf16.msra.mxu0 %v525
    %588 = vmatpush.bf16.msra.mxu0 %v523
    %589 = vmatpush.bf16.msra.mxu0 %v521
    %590 = vmatpush.bf16.msra.mxu0 %v519
    %591 = vmatpush.bf16.msra.mxu0 %v517
    %592 = vmatpush.bf16.msra.mxu0 %v515
    %593 = vmatmul.bf16.gmra.mxu0 %v438
    %v594 = vpop.f32.mrf.mxu0
    %v595 = vadd.f32 %v463, %v594
    %v596 = vpop.f32.mrf.mxu0
    %v597 = vadd.f32 %v463, %v596
    %598 = vmatmul.bf16.gmra.mxu0 %v439
    %v599 = vpop.f32.mrf.mxu0
    %v600 = vadd.f32 %v463, %v599
    %v601 = vpop.f32.mrf.mxu0
    %v602 = vadd.f32 %v463, %v601
    %603 = vmatmul.bf16.gmra.mxu0 %v440
    %v604 = vpop.f32.mrf.mxu0
    %v605 = vadd.f32 %v463, %v604
    %v606 = vpop.f32.mrf.mxu0
    %v607 = vadd.f32 %v463, %v606
    %608 = vmatmul.bf16.gmra.mxu0 %v441
    %v609 = vpop.f32.mrf.mxu0
    %v610 = vadd.f32 %v463, %v609
    %v611 = vpop.f32.mrf.mxu0
    %v612 = vadd.f32 %v463, %v611
    %613 = vmatmul.bf16.gmra.mxu0 %v442
    %v614 = vpop.f32.mrf.mxu0
    %v615 = vadd.f32 %v463, %v614
    %v616 = vpop.f32.mrf.mxu0
    %v617 = vadd.f32 %v463, %v616
    %618 = vmatmul.bf16.gmra.mxu0 %v443
    %v619 = vpop.f32.mrf.mxu0
    %v620 = vadd.f32 %v463, %v619
    %v621 = vpop.f32.mrf.mxu0
    %v622 = vadd.f32 %v463, %v621
    %623 = vdwg.mxu0
    %v624 = vmax.f32 %v556, 0.0
    %v625 = vmax.f32 %v595, 0.0
    %v626 = vmax.f32 %v558, 0.0
    %v627 = vmax.f32 %v597, 0.0
    %v628 = vmax.f32 %v561, 0.0
    %v629 = vmax.f32 %v600, 0.0
    %v630 = vmax.f32 %v563, 0.0
    %v631 = vmax.f32 %v602, 0.0
    %v632 = vmax.f32 %v566, 0.0
    %v633 = vmax.f32 %v605, 0.0
    %v634 = vmax.f32 %v568, 0.0
    %v635 = vmax.f32 %v607, 0.0
    %v636 = vmax.f32 %v571, 0.0
    %v637 = vmax.f32 %v610, 0.0
    %v638 = vmax.f32 %v573, 0.0
    %v639 = vmax.f32 %v612, 0.0
    %v640 = vmax.f32 %v576, 0.0
    %v641 = vmax.f32 %v615, 0.0
    %v642 = vmax.f32 %v578, 0.0
    %v643 = vmax.f32 %v617, 0.0
    %v644 = vmax.f32 %v581, 0.0
    %v645 = vmax.f32 %v620, 0.0
    %v646 = vmax.f32 %v583, 0.0
    %v647 = vmax.f32 %v622, 0.0
    %v648 = vpack.c.bf16 %v626, %v624
    %v649 = vpack.c.bf16 %v627, %v625
    %v650 = vpack.c.bf16 %v630, %v628
    %v651 = vpack.c.bf16 %v631, %v629
    %v652 = vpack.c.bf16 %v634, %v632
    %v653 = vpack.c.bf16 %v635, %v633
    %v654 = vpack.c.bf16 %v638, %v636
    %v655 = vpack.c.bf16 %v639, %v637
    %v656 = vpack.c.bf16 %v642, %v640
    %v657 = vpack.c.bf16 %v643, %v641
    %v658 = vpack.c.bf16 %v646, %v644
    %v659 = vpack.c.bf16 %v647, %v645
    %v660 = vld [vmem:[#allocation5] sm:$0xff]
    %v661 = vld [vmem:[#allocation5 + $0x8] sm:$0xff]
    %v662 = vld [vmem:[#allocation5 + $0x10] sm:$0xff]
    %v663 = vld [vmem:[#allocation5 + $0x18] sm:$0xff]
    %v664 = vld [vmem:[#allocation5 + $0x20] sm:$0xff]
    %v665 = vld [vmem:[#allocation5 + $0x28] sm:$0xff]
    %v666 = vld [vmem:[#allocation5 + $0x30] sm:$0xff]
    %v667 = vld [vmem:[#allocation5 + $0x38] sm:$0xff]
    %v668 = vld [vmem:[#allocation5 + $0x40] sm:$0xff]
    %v669 = vld [vmem:[#allocation5 + $0x48] sm:$0xff]
    %v670 = vld [vmem:[#allocation5 + $0x50] sm:$0xff]
    %v671 = vld [vmem:[#allocation5 + $0x58] sm:$0xff]
    %v672 = vld [vmem:[#allocation5 + $0x60] sm:$0xff]
    %v673 = vld [vmem:[#allocation5 + $0x68] sm:$0xff]
    %v674 = vld [vmem:[#allocation5 + $0x70] sm:$0xff]
    %v675 = vld [vmem:[#allocation5 + $0x78] sm:$0xff]
    %v676 = vld [vmem:[#allocation5 + $0x80] sm:$0xff]
    %v677 = vld [vmem:[#allocation5 + $0x88] sm:$0xff]
    %v678 = vld [vmem:[#allocation5 + $0x90] sm:$0xff]
    %v679 = vld [vmem:[#allocation5 + $0x98] sm:$0xff]
    %v680 = vld [vmem:[#allocation5 + $0xa0] sm:$0xff]
    %v681 = vld [vmem:[#allocation5 + $0xa8] sm:$0xff]
    %v682 = vld [vmem:[#allocation5 + $0xb0] sm:$0xff]
    %v683 = vld [vmem:[#allocation5 + $0xb8] sm:$0xff]
    %v684 = vld [vmem:[#allocation5 + $0xc0] sm:$0xff]
    %v685 = vld [vmem:[#allocation5 + $0xc8] sm:$0xff]
    %v686 = vld [vmem:[#allocation5 + $0xd0] sm:$0xff]
    %v687 = vld [vmem:[#allocation5 + $0xd8] sm:$0xff]
    %v688 = vld [vmem:[#allocation5 + $0xe0] sm:$0xff]
    %v689 = vld [vmem:[#allocation5 + $0xe8] sm:$0xff]
    %v690 = vld [vmem:[#allocation5 + $0xf0] sm:$0xff]
    %v691 = vld [vmem:[#allocation5 + $0xf8] sm:$0xff]
    %v692 = vld [vmem:[%s8] sm:$0x3]
    %v694 = vperm.slane %v692, 0
    %v695 = vperm.slane %v692, 1
    %v730 = vunpack.c.l.b16 %v660
    %v731 = vunpack.c.h.b16 %v660
    %v732 = vunpack.c.l.b16 %v661
    %v733 = vunpack.c.h.b16 %v661
    %v734 = vunpack.c.l.b16 %v662
    %v735 = vunpack.c.h.b16 %v662
    %v736 = vunpack.c.l.b16 %v663
    %v737 = vunpack.c.h.b16 %v663
    %v738 = vunpack.c.l.b16 %v664
    %v739 = vunpack.c.h.b16 %v664
    %v740 = vunpack.c.l.b16 %v665
    %v741 = vunpack.c.h.b16 %v665
    %v742 = vunpack.c.l.b16 %v666
    %v743 = vunpack.c.h.b16 %v666
    %v744 = vunpack.c.l.b16 %v667
    %v745 = vunpack.c.h.b16 %v667
    %v746 = vunpack.c.l.b16 %v668
    %v747 = vunpack.c.h.b16 %v668
    %v748 = vunpack.c.l.b16 %v669
    %v749 = vunpack.c.h.b16 %v669
    %v750 = vunpack.c.l.b16 %v670
    %v751 = vunpack.c.h.b16 %v670
    %v752 = vunpack.c.l.b16 %v671
    %v753 = vunpack.c.h.b16 %v671
    %v754 = vunpack.c.l.b16 %v672
    %v755 = vunpack.c.h.b16 %v672
    %v756 = vunpack.c.l.b16 %v673
    %v757 = vunpack.c.h.b16 %v673
    %v758 = vunpack.c.l.b16 %v674
    %v759 = vunpack.c.h.b16 %v674
    %v760 = vunpack.c.l.b16 %v675
    %v761 = vunpack.c.h.b16 %v675
    %v762 = vunpack.c.l.b16 %v676
    %v763 = vunpack.c.h.b16 %v676
    %v764 = vunpack.c.l.b16 %v677
    %v765 = vunpack.c.h.b16 %v677
    %v766 = vunpack.c.l.b16 %v678
    %v767 = vunpack.c.h.b16 %v678
    %v768 = vunpack.c.l.b16 %v679
    %v769 = vunpack.c.h.b16 %v679
    %v770 = vunpack.c.l.b16 %v680
    %v771 = vunpack.c.h.b16 %v680
    %v772 = vunpack.c.l.b16 %v681
    %v773 = vunpack.c.h.b16 %v681
    %v774 = vunpack.c.l.b16 %v682
    %v775 = vunpack.c.h.b16 %v682
    %v776 = vunpack.c.l.b16 %v683
    %v777 = vunpack.c.h.b16 %v683
    %v778 = vunpack.c.l.b16 %v684
    %v779 = vunpack.c.h.b16 %v684
    %v780 = vunpack.c.l.b16 %v685
    %v781 = vunpack.c.h.b16 %v685
    %v782 = vunpack.c.l.b16 %v686
    %v783 = vunpack.c.h.b16 %v686
    %v784 = vunpack.c.l.b16 %v687
    %v785 = vunpack.c.h.b16 %v687
    %v786 = vunpack.c.l.b16 %v688
    %v787 = vunpack.c.h.b16 %v688
    %v788 = vunpack.c.l.b16 %v689
    %v789 = vunpack.c.h.b16 %v689
    %v790 = vunpack.c.l.b16 %v690
    %v791 = vunpack.c.h.b16 %v690
    %v792 = vunpack.c.l.b16 %v691
    %v793 = vunpack.c.h.b16 %v691
    %v794 = vpack.c.b16 %v732, %v730
    %v795 = vpack.c.b16 %v733, %v731
    %v796 = vpack.c.b16 %v736, %v734
    %v797 = vpack.c.b16 %v737, %v735
    %v798 = vpack.c.b16 %v740, %v738
    %v799 = vpack.c.b16 %v741, %v739
    %v800 = vpack.c.b16 %v744, %v742
    %v801 = vpack.c.b16 %v745, %v743
    %v802 = vpack.c.b16 %v748, %v746
    %v803 = vpack.c.b16 %v749, %v747
    %v804 = vpack.c.b16 %v752, %v750
    %v805 = vpack.c.b16 %v753, %v751
    %v806 = vpack.c.b16 %v756, %v754
    %v807 = vpack.c.b16 %v757, %v755
    %v808 = vpack.c.b16 %v760, %v758
    %v809 = vpack.c.b16 %v761, %v759
    %v810 = vpack.c.b16 %v764, %v762
    %v811 = vpack.c.b16 %v765, %v763
    %v812 = vpack.c.b16 %v768, %v766
    %v813 = vpack.c.b16 %v769, %v767
    %v814 = vpack.c.b16 %v772, %v770
    %v815 = vpack.c.b16 %v773, %v771
    %v816 = vpack.c.b16 %v776, %v774
    %v817 = vpack.c.b16 %v777, %v775
    %v818 = vpack.c.b16 %v780, %v778
    %v819 = vpack.c.b16 %v781, %v779
    %v820 = vpack.c.b16 %v784, %v782
    %v821 = vpack.c.b16 %v785, %v783
    %v822 = vpack.c.b16 %v788, %v786
    %v823 = vpack.c.b16 %v789, %v787
    %v824 = vpack.c.b16 %v792, %v790
    %v825 = vpack.c.b16 %v793, %v791
    %858 = vmatpush.bf16.msra.mxu0 %v808
    %859 = vmatpush.bf16.msra.mxu0 %v806
    %860 = vmatpush.bf16.msra.mxu0 %v804
    %861 = vmatpush.bf16.msra.mxu0 %v802
    %862 = vmatpush.bf16.msra.mxu0 %v800
    %863 = vmatpush.bf16.msra.mxu0 %v798
    %864 = vmatpush.bf16.msra.mxu0 %v796
    %865 = vmatpush.bf16.msra.mxu0 %v794
    %866 = vmatmul.bf16.gmra.mxu0 %v648
    %v867 = vpop.f32.mrf.mxu0
    %v868 = vadd.f32 %v694, %v867
    %v869 = vpop.f32.mrf.mxu0
    %v870 = vadd.f32 %v694, %v869
    %871 = vmatmul.bf16.gmra.mxu0 %v650
    %v872 = vpop.f32.mrf.mxu0
    %v873 = vadd.f32 %v694, %v872
    %v874 = vpop.f32.mrf.mxu0
    %v875 = vadd.f32 %v694, %v874
    %876 = vmatmul.bf16.gmra.mxu0 %v652
    %v877 = vpop.f32.mrf.mxu0
    %v878 = vadd.f32 %v694, %v877
    %v879 = vpop.f32.mrf.mxu0
    %v880 = vadd.f32 %v694, %v879
    %881 = vmatmul.bf16.gmra.mxu0 %v654
    %v882 = vpop.f32.mrf.mxu0
    %v883 = vadd.f32 %v694, %v882
    %v884 = vpop.f32.mrf.mxu0
    %v885 = vadd.f32 %v694, %v884
    %886 = vmatmul.bf16.gmra.mxu0 %v656
    %v887 = vpop.f32.mrf.mxu0
    %v888 = vadd.f32 %v694, %v887
    %v889 = vpop.f32.mrf.mxu0
    %v890 = vadd.f32 %v694, %v889
    %891 = vmatmul.bf16.gmra.mxu0 %v658
    %v892 = vpop.f32.mrf.mxu0
    %v893 = vadd.f32 %v694, %v892
    %v894 = vpop.f32.mrf.mxu0
    %v895 = vadd.f32 %v694, %v894
    %896 = vdwg.mxu0
    %897 = vmatpush.bf16.msra.mxu0 %v824
    %898 = vmatpush.bf16.msra.mxu0 %v822
    %899 = vmatpush.bf16.msra.mxu0 %v820
    %900 = vmatpush.bf16.msra.mxu0 %v818
    %901 = vmatpush.bf16.msra.mxu0 %v816
    %902 = vmatpush.bf16.msra.mxu0 %v814
    %903 = vmatpush.bf16.msra.mxu0 %v812
    %904 = vmatpush.bf16.msra.mxu0 %v810
    %905 = vmatmul.bf16.gmra.mxu0 %v649
    %v906 = vpop.f32.mrf.mxu0
    %v907 = vadd.f32 %v868, %v906
    %v908 = vpop.f32.mrf.mxu0
    %v909 = vadd.f32 %v870, %v908
    %910 = vmatmul.bf16.gmra.mxu0 %v651
    %v911 = vpop.f32.mrf.mxu0
    %v912 = vadd.f32 %v873, %v911
    %v913 = vpop.f32.mrf.mxu0
    %v914 = vadd.f32 %v875, %v913
    %915 = vmatmul.bf16.gmra.mxu0 %v653
    %v916 = vpop.f32.mrf.mxu0
    %v917 = vadd.f32 %v878, %v916
    %v918 = vpop.f32.mrf.mxu0
    %v919 = vadd.f32 %v880, %v918
    %920 = vmatmul.bf16.gmra.mxu0 %v655
    %v921 = vpop.f32.mrf.mxu0
    %v922 = vadd.f32 %v883, %v921
    %v923 = vpop.f32.mrf.mxu0
    %v924 = vadd.f32 %v885, %v923
    %925 = vmatmul.bf16.gmra.mxu0 %v657
    %v926 = vpop.f32.mrf.mxu0
    %v927 = vadd.f32 %v888, %v926
    %v928 = vpop.f32.mrf.mxu0
    %v929 = vadd.f32 %v890, %v928
    %930 = vmatmul.bf16.gmra.mxu0 %v659
    %v931 = vpop.f32.mrf.mxu0
    %v932 = vadd.f32 %v893, %v931
    %v933 = vpop.f32.mrf.mxu0
    %v934 = vadd.f32 %v895, %v933
    %935 = vdwg.mxu0
    %936 = vmatpush.bf16.msra.mxu0 %v809
    %937 = vmatpush.bf16.msra.mxu0 %v807
    %938 = vmatpush.bf16.msra.mxu0 %v805
    %939 = vmatpush.bf16.msra.mxu0 %v803
    %940 = vmatpush.bf16.msra.mxu0 %v801
    %941 = vmatpush.bf16.msra.mxu0 %v799
    %942 = vmatpush.bf16.msra.mxu0 %v797
    %943 = vmatpush.bf16.msra.mxu0 %v795
    %944 = vmatmul.bf16.gmra.mxu0 %v648
    %v945 = vpop.f32.mrf.mxu0
    %v946 = vadd.f32 %v695, %v945
    %v947 = vpop.f32.mrf.mxu0
    %v948 = vadd.f32 %v695, %v947
    %949 = vmatmul.bf16.gmra.mxu0 %v650
    %v950 = vpop.f32.mrf.mxu0
    %v951 = vadd.f32 %v695, %v950
    %v952 = vpop.f32.mrf.mxu0
    %v953 = vadd.f32 %v695, %v952
    %954 = vmatmul.bf16.gmra.mxu0 %v652
    %v955 = vpop.f32.mrf.mxu0
    %v956 = vadd.f32 %v695, %v955
    %v957 = vpop.f32.mrf.mxu0
    %v958 = vadd.f32 %v695, %v957
    %959 = vmatmul.bf16.gmra.mxu0 %v654
    %v960 = vpop.f32.mrf.mxu0
    %v961 = vadd.f32 %v695, %v960
    %v962 = vpop.f32.mrf.mxu0
    %v963 = vadd.f32 %v695, %v962
    %964 = vmatmul.bf16.gmra.mxu0 %v656
    %v965 = vpop.f32.mrf.mxu0
    %v966 = vadd.f32 %v695, %v965
    %v967 = vpop.f32.mrf.mxu0
    %v968 = vadd.f32 %v695, %v967
    %969 = vmatmul.bf16.gmra.mxu0 %v658
    %v970 = vpop.f32.mrf.mxu0
    %v971 = vadd.f32 %v695, %v970
    %v972 = vpop.f32.mrf.mxu0
    %v973 = vadd.f32 %v695, %v972
    %974 = vdwg.mxu0
    %975 = vmatpush.bf16.msra.mxu0 %v825
    %976 = vmatpush.bf16.msra.mxu0 %v823
    %977 = vmatpush.bf16.msra.mxu0 %v821
    %978 = vmatpush.bf16.msra.mxu0 %v819
    %979 = vmatpush.bf16.msra.mxu0 %v817
    %980 = vmatpush.bf16.msra.mxu0 %v815
    %981 = vmatpush.bf16.msra.mxu0 %v813
    %982 = vmatpush.bf16.msra.mxu0 %v811
    %983 = vmatmul.bf16.gmra.mxu0 %v649
    %v984 = vpop.f32.mrf.mxu0
    %v985 = vadd.f32 %v946, %v984
    %v986 = vpop.f32.mrf.mxu0
    %v987 = vadd.f32 %v948, %v986
    %988 = vmatmul.bf16.gmra.mxu0 %v651
    %v989 = vpop.f32.mrf.mxu0
    %v990 = vadd.f32 %v951, %v989
    %v991 = vpop.f32.mrf.mxu0
    %v992 = vadd.f32 %v953, %v991
    %993 = vmatmul.bf16.gmra.mxu0 %v653
    %v994 = vpop.f32.mrf.mxu0
    %v995 = vadd.f32 %v956, %v994
    %v996 = vpop.f32.mrf.mxu0
    %v997 = vadd.f32 %v958, %v996
    %998 = vmatmul.bf16.gmra.mxu0 %v655
    %v999 = vpop.f32.mrf.mxu0
    %v1000 = vadd.f32 %v961, %v999
    %v1001 = vpop.f32.mrf.mxu0
    %v1002 = vadd.f32 %v963, %v1001
    %1003 = vmatmul.bf16.gmra.mxu0 %v657
    %v1004 = vpop.f32.mrf.mxu0
    %v1005 = vadd.f32 %v966, %v1004
    %v1006 = vpop.f32.mrf.mxu0
    %v1007 = vadd.f32 %v968, %v1006
    %1008 = vmatmul.bf16.gmra.mxu0 %v659
    %v1009 = vpop.f32.mrf.mxu0
    %v1010 = vadd.f32 %v971, %v1009
    %v1011 = vpop.f32.mrf.mxu0
    %v1012 = vadd.f32 %v973, %v1011
    %1013 = vdwg.mxu0
    %v1014 = vpack.c.bf16 %v985, %v907
    %v1015 = vpack.c.bf16 %v987, %v909
    %v1016 = vpack.c.bf16 %v990, %v912
    %v1017 = vpack.c.bf16 %v992, %v914
    %v1018 = vpack.c.bf16 %v995, %v917
    %v1019 = vpack.c.bf16 %v997, %v919
    %v1020 = vpack.c.bf16 %v1000, %v922
    %v1021 = vpack.c.bf16 %v1002, %v924
    %v1022 = vpack.c.bf16 %v1005, %v927
    %v1023 = vpack.c.bf16 %v1007, %v929
    %v1024 = vpack.c.bf16 %v1010, %v932
    %v1025 = vpack.c.bf16 %v1012, %v934
    %1026 = vst [vmem:[#allocation7] sm:$0xff] %v1014
    %1027 = vst [vmem:[#allocation7 + $0x8] sm:$0xff] %v1015
    %1028 = vst [vmem:[#allocation7 + $0x10] sm:$0xff] %v1016
    %1029 = vst [vmem:[#allocation7 + $0x18] sm:$0xff] %v1017
    %1030 = vst [vmem:[#allocation7 + $0x20] sm:$0xff] %v1018
    %1031 = vst [vmem:[#allocation7 + $0x28] sm:$0xff] %v1019
    %1032 = vst [vmem:[#allocation7 + $0x30] sm:$0xff] %v1020
    %1033 = vst [vmem:[#allocation7 + $0x38] sm:$0xff] %v1021
    %1034 = vst [vmem:[#allocation7 + $0x40] sm:$0xff] %v1022
    %1035 = vst [vmem:[#allocation7 + $0x48] sm:$0xff] %v1023
    %1036 = vst [vmem:[#allocation7 + $0x50] sm:$0xff] %v1024
    %1037 = vst [vmem:[#allocation7 + $0x58] sm:$0xff] %v1025
    // Predicated region
    $region46: #{tpu_custom_call.1} parent=1 // pred_check
      _
    $region47: #{tpu_custom_call.1} parent=1 // pred_check_branch
      %1039 = sbr.rel (0) target = $region49
    $region48: #{tpu_custom_call.1} parent=1 // pred_region
      %1041 = vsyncadd [#allocation4], 0
      %s1042 = sshll.u32 [#allocation7], 4
      %s1043 = int_to_ptr.vmem [resolvable:$true] %s1042
      %s1044 = sshll.u32 %s9, 4
      %s1045 = int_to_ptr.hbm [resolvable:$true] %s1044
      %1050 = dma.vmem_to_hbm [thread:$0]  %s1043, 1536, %s1045, [#allocation4], 128, 128, 8
    $region49: #{tpu_custom_call.1} parent=1 // pred_fallthru
      _
    // Predicated region
    $region50: #{tpu_custom_call.1} parent=1 // pred_check
      _
    $region51: #{tpu_custom_call.1} parent=1 // pred_check_branch
      %1052 = sbr.rel (0) target = $region53
    $region52: #{tpu_custom_call.1} parent=1 // pred_region
      %1054 = dma.done [#allocation4], 1536
    $region53: #{tpu_custom_call.1} parent=1 // pred_fallthru
      _
    %1055 = vsyncpa [#allocation3], 1
    %1056 = vsyncpa [#allocation6], 1
    %1057 = vsyncpa [#allocation4], 1

</llo_original>
